<compile_context>
chip_gen: v7x
topology: tpu7x:2x2x1
jax: 0.10.0
libtpu: 0.0.40
codegen_flags: <defaults>
</compile_context>

<pallas_src>
import jax
import jax.numpy as jnp
from jax.experimental import pallas as pl
from jax.experimental.pallas import tpu as pltpu

LANE = 128  # vreg lane width (last dim)


def _round_up(n, m):
    return ((n + m - 1) // m) * m


def _sublane_multiple(dtype):
    # Sub-32-bit dtypes pack two rows per sublane -> minimum unmasked tile 16.
    return 16 if jnp.dtype(dtype).itemsize < 4 else 8


def _num_tensorcores():
    """TensorCores per chip (2 on v7x, 1 on v5e/v6e).  Defensive: default 1."""
    try:
        return max(1, int(getattr(jax.devices()[0], "num_cores", 1) or 1))
    except Exception:
        return 1


def linear_block_kernel(x_ref, w1_ref, b1_ref, w2_ref, b2_ref, o_ref):
    # First linear (MXU, f32 accumulate) + bias + ReLU.
    h = jnp.dot(x_ref[...], w1_ref[...], preferred_element_type=jnp.float32)
    h = jnp.maximum(h + b1_ref[...], 0.0)            # (tm, n_hid_p) + (1, n_hid_p)
    # TODO(synk): nn.Dropout is identity at inference; training-mode dropout
    # would need pltpu.prng_seed + pltpu.prng_random_bits here, not a wrapper mask.
    # Second linear: cast the f32 intermediate back to the compute dtype so the
    # second matmul also runs at full MXU rate; accumulate in f32.
    y = jnp.dot(h.astype(w2_ref.dtype), w2_ref[...],
                preferred_element_type=jnp.float32)
    o_ref[...] = (y + b2_ref[...]).astype(o_ref.dtype)


def prepare_linear_block_params(w1, b1, w2, b2, *, compute_dtype=jnp.bfloat16):
    """One-time weight prep (pad + cast), hoisted out of the forward pass.

    w1: (n_in, n_hid)   pre-transposed PyTorch w_1.weight
    b1: (n_hid,)        w_1.bias
    w2: (n_hid, n_out)  pre-transposed PyTorch w_2.weight
    b2: (n_out,)        w_2.bias
    """
    n_in, n_hid = w1.shape
    n_out = w2.shape[1]
    sub = _sublane_multiple(compute_dtype)

    # K (n_in) only needs sublane alignment (it is W1's second-to-last dim and
    # x's full-array lane dim); hidden/output dims are padded lane-dense to 128
    # so every matmul output and store is an unmasked full-lane access.
    n_in_p = _round_up(n_in, sub)
    n_hid_p = _round_up(n_hid, LANE)
    n_out_p = _round_up(n_out, LANE)

    cd = jnp.dtype(compute_dtype)
    w1_p = jnp.zeros((n_in_p, n_hid_p), cd).at[:n_in, :n_hid].set(w1.astype(cd))
    w2_p = jnp.zeros((n_hid_p, n_out_p), cd).at[:n_hid, :n_out].set(w2.astype(cd))
    b1_p = jnp.zeros((1, n_hid_p), jnp.float32).at[:, :n_hid].set(
        jnp.reshape(b1, (1, n_hid)).astype(jnp.float32))
    b2_p = jnp.zeros((1, n_out_p), jnp.float32).at[:, :n_out].set(
        jnp.reshape(b2, (1, n_out)).astype(jnp.float32))

    return {
        "w1": w1_p, "b1": b1_p, "w2": w2_p, "b2": b2_p,
        "n_in": n_in, "n_hid": n_hid, "n_out": n_out,
        "n_in_p": n_in_p, "n_hid_p": n_hid_p, "n_out_p": n_out_p,
        "compute_dtype": cd,
    }


def _weight_spec(block_shape, single_buffered):
    # Grid-invariant operand: constant index_map.  Request single buffering so
    # resident weights are not double-buffered (halves weight VMEM; matters
    # once n_hid grows toward v7x's 64 MiB VMEM).
    if single_buffered:
        try:
            return pl.BlockSpec(block_shape, lambda i: (0, 0),
                                pipeline_mode=pl.Buffered(1))
        except (TypeError, AttributeError):
            pass  # jax version without pipeline_mode / Buffered
    return pl.BlockSpec(block_shape, lambda i: (0, 0))


def _forward_pallas(params, x_p, tm, out_dtype, single_buffer_weights):
    B_p = x_p.shape[0]
    n_in_p = params["n_in_p"]
    n_hid_p = params["n_hid_p"]
    n_out_p = params["n_out_p"]
    cd = params["compute_dtype"]

    # Explicit VMEM budget from the actual tile footprint (+2x headroom),
    # clamped so the default stays comfortably under v7x's 64 MiB physical.
    need = (2 * tm * n_in_p * cd.itemsize                        # x (double-buffered)
            + 2 * tm * n_out_p * jnp.dtype(out_dtype).itemsize   # out (double-buffered)
            + 2 * (n_in_p * n_hid_p + n_hid_p * n_out_p) * cd.itemsize  # weights
            + 2 * (n_hid_p + n_out_p) * 4                        # biases
            + 3 * tm * n_hid_p * 4)                              # f32 intermediate + cast copy
    vmem_limit = int(min(max(2 * need, 8 << 20), 48 << 20))

    grid = (B_p // tm,)
    return pl.pallas_call(
        linear_block_kernel,
        out_shape=jax.ShapeDtypeStruct((B_p, n_out_p), out_dtype),
        grid_spec=pltpu.PrefetchScalarGridSpec(
            num_scalar_prefetch=0,
            grid=grid,
            in_specs=[
                pl.BlockSpec((tm, n_in_p), lambda i: (i, 0)),             # x row tile
                _weight_spec((n_in_p, n_hid_p), single_buffer_weights),   # W1 (resident)
                _weight_spec((1, n_hid_p), single_buffer_weights),        # b1
                _weight_spec((n_hid_p, n_out_p), single_buffer_weights),  # W2 (resident)
                _weight_spec((1, n_out_p), single_buffer_weights),        # b2
            ],
            out_specs=pl.BlockSpec((tm, n_out_p), lambda i: (i, 0)),
        ),
        compiler_params=pltpu.CompilerParams(
            # Batch axis is independent: shards across both TCs on v7x; a
            # measured no-op on single-TC v5e/v6e.
            dimension_semantics=("parallel",),
            vmem_limit_bytes=vmem_limit,
        ),
    )(x_p, params["w1"], params["b1"], params["w2"], params["b2"])


def linear_block_apply(params, x, *, block_rows=None, num_cores=None,
                       out_dtype=None):
    """Fused y = relu(x @ w1 + b1) @ w2 + b2 with prepared (pre-padded) params."""
    B, n_in = x.shape
    assert n_in == params["n_in"], "x feature dim does not match prepared params"
    cd = params["compute_dtype"]
    n_in_p = params["n_in_p"]
    n_out = params["n_out"]
    out_dtype = jnp.dtype(x.dtype if out_dtype is None else out_dtype)
    sub = _sublane_multiple(cd)
    if num_cores is None:
        num_cores = _num_tensorcores()

    # Row tile: split across TensorCores only when there are >=2 of them (v7x);
    # otherwise one big tile amortizes the ~0.35us per-grid-step overhead.
    if block_rows is not None:
        tm = _round_up(max(1, min(block_rows, B)), sub)
    elif num_cores > 1:
        tm = min(_round_up(pl.cdiv(B, num_cores), sub), 256)
    else:
        tm = min(_round_up(B, sub), 1024)
    B_p = _round_up(B, tm)

    # TODO(synk): at these feature sizes and tiny B the Pallas call is mostly
    # launch/DMA floor; latency-critical callers should batch several
    # LinearBlock instances into one pallas_call (leading grid axis) or let XLA
    # fuse the two GEMMs instead.

    # Per-call activation prep: just a dtype cast at aligned shapes (the demo
    # shapes need no padding); zero-padding otherwise.  Padded batch rows
    # compute relu(b1) @ W2 + b2 (garbage) and are sliced off below.
    x_c = x.astype(cd)
    if (B_p, n_in_p) != (B, n_in):
        x_c = jnp.zeros((B_p, n_in_p), cd).at[:B, :n_in].set(x_c)

    try:
        out_p = _forward_pallas(params, x_c, tm, out_dtype, True)
    except Exception:
        # Fallback for jax versions that reject Buffered(1) on the primary
        # pallas_call pipeline: double-buffered weights (a few extra KiB here).
        out_p = _forward_pallas(params, x_c, tm, out_dtype, False)

    return out_p[:B, :n_out]


def linear_block(x, w1, b1, w2, b2, *, compute_dtype=jnp.bfloat16, **kwargs):
    """One-shot convenience wrapper.  Prefer prepare_linear_block_params() +
    linear_block_apply() so the weight padding/casts run once, not per forward."""
    params = prepare_linear_block_params(w1, b1, w2, b2,
                                         compute_dtype=compute_dtype)
    return linear_block_apply(params, x, **kwargs)


def xavier_normal(key, fan_out, fan_in, gain):
    # Matches torch.nn.init.xavier_normal_: std = gain * sqrt(2 / (fan_in + fan_out))
    std = gain * (2.0 / (fan_in + fan_out)) ** 0.5
    return std * jax.random.normal(key, (fan_out, fan_in), dtype=jnp.float32)


if __name__ == "__main__":
    # Small shapes implied by the module: n_in=32, n_hid=64, n_out=16, batch=16.
    B, n_in, n_hid, n_out = 16, 32, 64, 16
    gain = 1.0

    key = jax.random.PRNGKey(0)
    kx, k1, k2, kb1, kb2, kx2 = jax.random.split(key, 6)

    x = jax.random.normal(kx, (B, n_in), dtype=jnp.float32)

    # PyTorch stores Linear weight as (out, in); xavier_normal_ init, zero bias.
    w1 = xavier_normal(k1, n_hid, n_in, gain).T   # (n_in, n_hid)
    w2 = xavier_normal(k2, n_out, n_hid, gain).T  # (n_hid, n_out)
    b1 = jnp.zeros((n_hid,), dtype=jnp.float32)
    b2 = jnp.zeros((n_out,), dtype=jnp.float32)

    # Pure-JAX f32 reference of the PyTorch forward (dropout = identity at eval).
    ref = jnp.maximum(x @ w1 + b1, 0.0) @ w2 + b2

    # bf16-MXU path (weights prepared once, reused across forwards).
    params_bf16 = prepare_linear_block_params(w1, b1, w2, b2)
    out = jax.block_until_ready(linear_block_apply(params_bf16, x))
    assert out.shape == (B, n_out)
    assert jnp.allclose(out, ref, atol=5e-2, rtol=5e-2), "bf16-path mismatch"

    # Full-f32 compute path must match the reference tightly.
    params_f32 = prepare_linear_block_params(w1, b1, w2, b2,
                                             compute_dtype=jnp.float32)
    out_f32 = jax.block_until_ready(linear_block_apply(params_f32, x))
    assert jnp.allclose(out_f32, ref, atol=1e-5, rtol=1e-5), "f32-path mismatch"

    # Multi-step grid + row-padding path (v7x-style 2-core split), with nonzero
    # biases to confirm padded garbage rows are correctly sliced off.
    B2 = 40
    x2 = jax.random.normal(kx2, (B2, n_in), dtype=jnp.float32)
    b1n = 0.1 * jax.random.normal(kb1, (n_hid,), dtype=jnp.float32)
    b2n = 0.1 * jax.random.normal(kb2, (n_out,), dtype=jnp.float32)
    ref2 = jnp.maximum(x2 @ w1 + b1n, 0.0) @ w2 + b2n
    params2 = prepare_linear_block_params(w1, b1n, w2, b2n,
                                          compute_dtype=jnp.float32)
    out2 = jax.block_until_ready(linear_block_apply(params2, x2, num_cores=2))
    assert out2.shape == (B2, n_out)
    assert jnp.allclose(out2, ref2, atol=1e-5, rtol=1e-5), "grid-split mismatch"

    print("KERNEL_OK")
</pallas_src>

<mosaic_0001>
module attributes {stable_mosaic.version = 11 : i64} {
  func.func @linear_block_kernel(%arg0: i32, %arg1: memref<16x32xbf16, #tpu.memory_space<vmem>>, %arg2: memref<32x128xbf16, #tpu.memory_space<vmem>>, %arg3: memref<1x128xf32, #tpu.memory_space<vmem>>, %arg4: memref<128x128xbf16, #tpu.memory_space<vmem>>, %arg5: memref<1x128xf32, #tpu.memory_space<vmem>>, %arg6: memref<16x128xf32, #tpu.memory_space<vmem>>) attributes {dimension_semantics = [#tpu.dimension_semantics<parallel>], iteration_bounds = array<i64: 1>, scalar_prefetch = 0 : i64, scratch_operands = 0 : i64, tpu.core_type = #tpu.core_type<tc>, window_params = [{transform_indices = @transform_0, window_bounds = array<i64: 16, 32>}, {pipeline_mode = #tpu.pipeline_mode<synchronous>, transform_indices = @transform_1, window_bounds = array<i64: 32, 128>}, {pipeline_mode = #tpu.pipeline_mode<synchronous>, transform_indices = @transform_2, window_bounds = array<i64: 1, 128>}, {pipeline_mode = #tpu.pipeline_mode<synchronous>, transform_indices = @transform_3, window_bounds = array<i64: 128, 128>}, {pipeline_mode = #tpu.pipeline_mode<synchronous>, transform_indices = @transform_4, window_bounds = array<i64: 1, 128>}, {transform_indices = @transform_5, window_bounds = array<i64: 16, 128>}]} {
    %c0 = arith.constant 0 : index
    %c0_0 = arith.constant 0 : index
    %0 = vector.load %arg1[%c0, %c0_0] : memref<16x32xbf16, #tpu.memory_space<vmem>>, vector<16x32xbf16>
    %c0_1 = arith.constant 0 : index
    %c0_2 = arith.constant 0 : index
    %1 = vector.load %arg2[%c0_1, %c0_2] : memref<32x128xbf16, #tpu.memory_space<vmem>>, vector<32x128xbf16>
    %cst = arith.constant dense<0.000000e+00> : vector<16x128xf32>
    %2 = tpu.matmul %0, %1, %cst {dimension_numbers = #tpu.dot_dimension_numbers<[1], [0], [0], [1], [0, 0, 1, 1], [], []>} : vector<16x32xbf16>, vector<32x128xbf16>, vector<16x128xf32> -> vector<16x128xf32>
    %c0_3 = arith.constant 0 : index
    %c0_4 = arith.constant 0 : index
    %3 = vector.load %arg3[%c0_3, %c0_4] : memref<1x128xf32, #tpu.memory_space<vmem>>, vector<1x128xf32>
    %4 = vector.broadcast %3 : vector<1x128xf32> to vector<16x128xf32>
    %5 = arith.addf %2, %4 : vector<16x128xf32>
    %cst_5 = arith.constant 0.000000e+00 : f32
    %6 = vector.broadcast %cst_5 : f32 to vector<16x128xf32>
    %7 = arith.maximumf %5, %6 : vector<16x128xf32>
    %8 = arith.truncf %7 : vector<16x128xf32> to vector<16x128xbf16>
    %c0_6 = arith.constant 0 : index
    %c0_7 = arith.constant 0 : index
    %9 = vector.load %arg4[%c0_6, %c0_7] : memref<128x128xbf16, #tpu.memory_space<vmem>>, vector<128x128xbf16>
    %cst_8 = arith.constant dense<0.000000e+00> : vector<16x128xf32>
    %10 = tpu.matmul %8, %9, %cst_8 {dimension_numbers = #tpu.dot_dimension_numbers<[1], [0], [0], [1], [0, 0, 1, 1], [], []>} : vector<16x128xbf16>, vector<128x128xbf16>, vector<16x128xf32> -> vector<16x128xf32>
    %c0_9 = arith.constant 0 : index
    %c0_10 = arith.constant 0 : index
    %11 = vector.load %arg5[%c0_9, %c0_10] : memref<1x128xf32, #tpu.memory_space<vmem>>, vector<1x128xf32>
    %12 = vector.broadcast %11 : vector<1x128xf32> to vector<16x128xf32>
    %13 = arith.addf %10, %12 : vector<16x128xf32>
    %c0_11 = arith.constant 0 : index
    %c0_12 = arith.constant 0 : index
    %14 = vector.load %arg6[%c0_11, %c0_12] : memref<16x128xf32, #tpu.memory_space<vmem>>, vector<16x128xf32>
    tpu.vector_store %arg6[%c0_11, %c0_12], %13 {strides = array<i32>} : memref<16x128xf32, #tpu.memory_space<vmem>>, vector<16x128xf32>,
    return
  }
  func.func @transform_0(%arg0: i32) -> (i32, i32) {
    %c0_i32 = arith.constant 0 : i32
    %c0_i32_0 = arith.constant 0 : i32
    return %arg0, %c0_i32 : i32, i32
  }
  func.func @transform_1(%arg0: i32) -> (i32, i32) {
    %c0_i32 = arith.constant 0 : i32
    %c0_i32_0 = arith.constant 0 : i32
    %c0_i32_1 = arith.constant 0 : i32
    return %c0_i32, %c0_i32_0 : i32, i32
  }
  func.func @transform_2(%arg0: i32) -> (i32, i32) {
    %c0_i32 = arith.constant 0 : i32
    %c0_i32_0 = arith.constant 0 : i32
    %c0_i32_1 = arith.constant 0 : i32
    return %c0_i32, %c0_i32_0 : i32, i32
  }
  func.func @transform_3(%arg0: i32) -> (i32, i32) {
    %c0_i32 = arith.constant 0 : i32
    %c0_i32_0 = arith.constant 0 : i32
    %c0_i32_1 = arith.constant 0 : i32
    return %c0_i32, %c0_i32_0 : i32, i32
  }
  func.func @transform_4(%arg0: i32) -> (i32, i32) {
    %c0_i32 = arith.constant 0 : i32
    %c0_i32_0 = arith.constant 0 : i32
    %c0_i32_1 = arith.constant 0 : i32
    return %c0_i32, %c0_i32_0 : i32, i32
  }
  func.func @transform_5(%arg0: i32) -> (i32, i32) {
    %c0_i32 = arith.constant 0 : i32
    %c0_i32_0 = arith.constant 0 : i32
    return %arg0, %c0_i32 : i32, i32
  }
}

module attributes {stable_mosaic.version = 11 : i64} {
  func.func @linear_block_kernel(%arg0: i32, %arg1: memref<16x32xbf16, #tpu.memory_space<vmem>>, %arg2: memref<32x128xbf16, #tpu.memory_space<vmem>>, %arg3: memref<1x128xf32, #tpu.memory_space<vmem>>, %arg4: memref<128x128xbf16, #tpu.memory_space<vmem>>, %arg5: memref<1x128xf32, #tpu.memory_space<vmem>>, %arg6: memref<16x128xf32, #tpu.memory_space<vmem>>) attributes {dimension_semantics = [#tpu.dimension_semantics<parallel>], iteration_bounds = array<i64: 1>, scalar_prefetch = 0 : i64, scratch_operands = 0 : i64, tpu.core_type = #tpu.core_type<tc>, window_params = [{transform_indices = @transform_0, window_bounds = array<i64: 16, 32>}, {pipeline_mode = #tpu.pipeline_mode<synchronous>, transform_indices = @transform_1, window_bounds = array<i64: 32, 128>}, {pipeline_mode = #tpu.pipeline_mode<synchronous>, transform_indices = @transform_2, window_bounds = array<i64: 1, 128>}, {pipeline_mode = #tpu.pipeline_mode<synchronous>, transform_indices = @transform_3, window_bounds = array<i64: 128, 128>}, {pipeline_mode = #tpu.pipeline_mode<synchronous>, transform_indices = @transform_4, window_bounds = array<i64: 1, 128>}, {transform_indices = @transform_5, window_bounds = array<i64: 16, 128>}]} {
    %c0 = arith.constant 0 : index
    %c0_0 = arith.constant 0 : index
    %0 = vector.load %arg1[%c0, %c0_0] : memref<16x32xbf16, #tpu.memory_space<vmem>>, vector<16x32xbf16>
    %c0_1 = arith.constant 0 : index
    %c0_2 = arith.constant 0 : index
    %1 = vector.load %arg2[%c0_1, %c0_2] : memref<32x128xbf16, #tpu.memory_space<vmem>>, vector<32x128xbf16>
    %cst = arith.constant dense<0.000000e+00> : vector<16x128xf32>
    %2 = tpu.matmul %0, %1, %cst {dimension_numbers = #tpu.dot_dimension_numbers<[1], [0], [0], [1], [0, 0, 1, 1], [], []>} : vector<16x32xbf16>, vector<32x128xbf16>, vector<16x128xf32> -> vector<16x128xf32>
    %c0_3 = arith.constant 0 : index
    %c0_4 = arith.constant 0 : index
    %3 = vector.load %arg3[%c0_3, %c0_4] : memref<1x128xf32, #tpu.memory_space<vmem>>, vector<1x128xf32>
    %4 = vector.broadcast %3 : vector<1x128xf32> to vector<16x128xf32>
    %5 = arith.addf %2, %4 : vector<16x128xf32>
    %cst_5 = arith.constant 0.000000e+00 : f32
    %6 = vector.broadcast %cst_5 : f32 to vector<16x128xf32>
    %7 = arith.maximumf %5, %6 : vector<16x128xf32>
    %8 = arith.truncf %7 : vector<16x128xf32> to vector<16x128xbf16>
    %c0_6 = arith.constant 0 : index
    %c0_7 = arith.constant 0 : index
    %9 = vector.load %arg4[%c0_6, %c0_7] : memref<128x128xbf16, #tpu.memory_space<vmem>>, vector<128x128xbf16>
    %cst_8 = arith.constant dense<0.000000e+00> : vector<16x128xf32>
    %10 = tpu.matmul %8, %9, %cst_8 {dimension_numbers = #tpu.dot_dimension_numbers<[1], [0], [0], [1], [0, 0, 1, 1], [], []>} : vector<16x128xbf16>, vector<128x128xbf16>, vector<16x128xf32> -> vector<16x128xf32>
    %c0_9 = arith.constant 0 : index
    %c0_10 = arith.constant 0 : index
    %11 = vector.load %arg5[%c0_9, %c0_10] : memref<1x128xf32, #tpu.memory_space<vmem>>, vector<1x128xf32>
    %12 = vector.broadcast %11 : vector<1x128xf32> to vector<16x128xf32>
    %13 = arith.addf %10, %12 : vector<16x128xf32>
    %c0_11 = arith.constant 0 : index
    %c0_12 = arith.constant 0 : index
    %14 = vector.load %arg6[%c0_11, %c0_12] : memref<16x128xf32, #tpu.memory_space<vmem>>, vector<16x128xf32>
    tpu.vector_store %arg6[%c0_11, %c0_12], %13 {strides = array<i32>} : memref<16x128xf32, #tpu.memory_space<vmem>>, vector<16x128xf32>,
    return
  }
  func.func @transform_0(%arg0: i32) -> (i32, i32) {
    %c0_i32 = arith.constant 0 : i32
    %c0_i32_0 = arith.constant 0 : i32
    return %arg0, %c0_i32 : i32, i32
  }
  func.func @transform_1(%arg0: i32) -> (i32, i32) {
    %c0_i32 = arith.constant 0 : i32
    %c0_i32_0 = arith.constant 0 : i32
    %c0_i32_1 = arith.constant 0 : i32
    return %c0_i32, %c0_i32_0 : i32, i32
  }
  func.func @transform_2(%arg0: i32) -> (i32, i32) {
    %c0_i32 = arith.constant 0 : i32
    %c0_i32_0 = arith.constant 0 : i32
    %c0_i32_1 = arith.constant 0 : i32
    return %c0_i32, %c0_i32_0 : i32, i32
  }
  func.func @transform_3(%arg0: i32) -> (i32, i32) {
    %c0_i32 = arith.constant 0 : i32
    %c0_i32_0 = arith.constant 0 : i32
    %c0_i32_1 = arith.constant 0 : i32
    return %c0_i32, %c0_i32_0 : i32, i32
  }
  func.func @transform_4(%arg0: i32) -> (i32, i32) {
    %c0_i32 = arith.constant 0 : i32
    %c0_i32_0 = arith.constant 0 : i32
    %c0_i32_1 = arith.constant 0 : i32
    return %c0_i32, %c0_i32_0 : i32, i32
  }
  func.func @transform_5(%arg0: i32) -> (i32, i32) {
    %c0_i32 = arith.constant 0 : i32
    %c0_i32_0 = arith.constant 0 : i32
    return %arg0, %c0_i32 : i32, i32
  }
}

</mosaic_0001>

<llo_original>
// kernel: tpu_custom_call.1
$region0: #{tpu_custom_call.1}
  #allocation0 [shape = 'u32[]', space=smem, size = 0x4, offset = 0x4, fixed_abs, tag = 'smem constant byte address 0x4 - core index']
  #allocation1 [shape = 'u32[144,128]{1,0:T(1,128)}', space=vmem, size = 0x12000, scoped, tag = 'internal scratch']
  %s0 = inlined_call_operand.hbm [shape: bf16[16,32], index: 0, kind: input, shape index: {}]
  %s1 = inlined_call_operand.hbm [shape: bf16[32,128], index: 1, kind: input, shape index: {}]
  %s2 = inlined_call_operand.vmem [shape: f32[1,128], index: 2, kind: input, shape index: {}]
  %s3 = inlined_call_operand.hbm [shape: bf16[128,128], index: 3, kind: input, shape index: {}]
  %s4 = inlined_call_operand.vmem [shape: f32[1,128], index: 4, kind: input, shape index: {}]
  %s5 = inlined_call_operand.hbm [shape: f32[16,128], index: 5, kind: output, shape index: {}]
  %s6 = sld [smem:[#allocation0]]
  $region42: #{tpu_custom_call.1} parent=0
    _
  %s8 = ssub.s32 1, %s6
  %s9 = scalar_select 0, %s8, %s6
  $region1: #{tpu_custom_call.1} parent=0
    #allocation2 [shape = 'u8[4096]{0}', space=vmem, size = 0x1000, scoped, tag = 'input window, operand 0, single buffered']
    #allocation3 [shape = 's32[1]{0}', space=sflag, size = 0x4, scoped, tag = 'scoped memory for tpu_custom_call.1']
    #allocation4 [shape = 's32[1]{0}', space=sflag, size = 0x4, scoped, tag = 'scoped memory for tpu_custom_call.1']
    #allocation5 [shape = 'u8[8192]{0}', space=vmem, size = 0x2000, scoped, tag = 'input window, operand 1, single buffered']
    #allocation6 [shape = 's32[1]{0}', space=sflag, size = 0x4, scoped, tag = 'scoped memory for tpu_custom_call.1']
    #allocation7 [shape = 'u8[32768]{0}', space=vmem, size = 0x8000, scoped, tag = 'input window, operand 3, single buffered']
    #allocation8 [shape = 'u8[8192]{0}', space=vmem, size = 0x2000, scoped, tag = 'output window, operand 0, single buffered']
    %10 = vsyncpa [#allocation3], 0
    %11 = vsyncpa [#allocation6], 0
    %12 = vsyncpa [#allocation4], 0
    // Predicated region
    $region2: #{tpu_custom_call.1} parent=1 // pred_check
      _
    $region3: #{tpu_custom_call.1} parent=1 // pred_check_branch
      %14 = sbr.rel (0) target = $region5
    $region4: #{tpu_custom_call.1} parent=1 // pred_region
      %s16 = ssub.s32 128, 128
      %17 = vsyncadd [#allocation3], %s16
      %s18 = sshll.u32 [#allocation2], 4
      %s19 = int_to_ptr.vmem [resolvable:$true] %s18
      %24 = dma.hbm_to_vmem [thread:$0]  %s0, 128, %s19, [#allocation3], 64, 64, 4
    $region5: #{tpu_custom_call.1} parent=1 // pred_fallthru
      _
    // Predicated region
    $region6: #{tpu_custom_call.1} parent=1 // pred_check
      _
    $region7: #{tpu_custom_call.1} parent=1 // pred_check_branch
      %26 = sbr.rel (0) target = $region9
    $region8: #{tpu_custom_call.1} parent=1 // pred_region
      %s28 = ssub.s32 256, 256
      %29 = vsyncadd [#allocation6], %s28
      %s30 = sshll.u32 [#allocation5], 4
      %s31 = int_to_ptr.vmem [resolvable:$true] %s30
      %36 = dma.hbm_to_vmem [thread:$0]  %s1, 256, %s31, [#allocation6], 64, 64, 4
    $region9: #{tpu_custom_call.1} parent=1 // pred_fallthru
      _
    // Predicated region
    $region10: #{tpu_custom_call.1} parent=1 // pred_check
      _
    $region11: #{tpu_custom_call.1} parent=1 // pred_check_branch
      %38 = sbr.rel (0) target = $region13
    $region12: #{tpu_custom_call.1} parent=1 // pred_region
      _
    $region13: #{tpu_custom_call.1} parent=1 // pred_fallthru
      _
    // Predicated region
    $region14: #{tpu_custom_call.1} parent=1 // pred_check
      _
    $region15: #{tpu_custom_call.1} parent=1 // pred_check_branch
      %40 = sbr.rel (0) target = $region17
    $region16: #{tpu_custom_call.1} parent=1 // pred_region
      %s42 = ssub.s32 1024, 1024
      %43 = vsyncadd [#allocation6], %s42
      %s44 = sshll.u32 [#allocation7], 4
      %s45 = int_to_ptr.vmem [resolvable:$true] %s44
      %50 = dma.hbm_to_vmem [thread:$0]  %s3, 1024, %s45, [#allocation6], 64, 64, 4
    $region17: #{tpu_custom_call.1} parent=1 // pred_fallthru
      _
    // Predicated region
    $region18: #{tpu_custom_call.1} parent=1 // pred_check
      _
    $region19: #{tpu_custom_call.1} parent=1 // pred_check_branch
      %52 = sbr.rel (0) target = $region21
    $region20: #{tpu_custom_call.1} parent=1 // pred_region
      _
    $region21: #{tpu_custom_call.1} parent=1 // pred_fallthru
      _
    // Predicated region
    $region22: #{tpu_custom_call.1} parent=1 // pred_check
      _
    $region23: #{tpu_custom_call.1} parent=1 // pred_check_branch
      %54 = sbr.rel (0) target = $region25
    $region24: #{tpu_custom_call.1} parent=1 // pred_region
      %55 = dma.done [#allocation3], 128
    $region25: #{tpu_custom_call.1} parent=1 // pred_fallthru
      _
    // Predicated region
    $region26: #{tpu_custom_call.1} parent=1 // pred_check
      _
    $region27: #{tpu_custom_call.1} parent=1 // pred_check_branch
      %57 = sbr.rel (0) target = $region29
    $region28: #{tpu_custom_call.1} parent=1 // pred_region
      %58 = dma.done [#allocation6], 256
    $region29: #{tpu_custom_call.1} parent=1 // pred_fallthru
      _
    // Predicated region
    $region30: #{tpu_custom_call.1} parent=1 // pred_check
      _
    $region31: #{tpu_custom_call.1} parent=1 // pred_check_branch
      %60 = sbr.rel (0) target = $region33
    $region32: #{tpu_custom_call.1} parent=1 // pred_region
      %61 = dma.done [#allocation6], 1024
    $region33: #{tpu_custom_call.1} parent=1 // pred_fallthru
      _
    %v63 = vld [vmem:[#allocation2] sm:$0xf]
    %v64 = vld [vmem:[#allocation2 + $0x4] sm:$0xf]
    %v65 = vld [vmem:[#allocation5] sm:$0xf]
    %v66 = vld [vmem:[#allocation5 + $0x4] sm:$0xf]
    %v67 = vld [vmem:[#allocation5 + $0x8] sm:$0xf]
    %v68 = vld [vmem:[#allocation5 + $0xc] sm:$0xf]
    %v69 = vld [vmem:[%s2] sm:$0x1]
    %v71 = vlaneseq
    %v72 = vshrl.u32 %v71, 7
    %v73 = vsub.s32 0, %v72
    %v74 = vrot.slane %v69, %v73
    %v78 = vunpack.c.l.b16 %v63
    %v79 = vunpack.c.l.b16 %v64
    %v80 = vpack.c.b16 %v79, %v78
    %v85 = vunpack.c.l.b16 %v65
    %v86 = vunpack.c.l.b16 %v66
    %v87 = vunpack.c.l.b16 %v67
    %v88 = vunpack.c.l.b16 %v68
    %v89 = vpack.c.b16 %v86, %v85
    %v90 = vpack.c.b16 %v88, %v87
    %vm93 = vcmask 261120
    %v95 = vsel %vm93, %v80, 0
    %97 = vmatprep.subr.bf16.mxu0 0
    %98 = vmatpush1.bf16.msra.mxu0 %v89
    %99 = vmatprep.subr.bf16.mxu0 0
    %100 = vmatpush1.bf16.msra.mxu0 %v90
    %101 = vmatprep.subr.bf16.mxu0 0
    %102 = vmatpush1.bf16.msra.mxu0 0
    %103 = vmatprep.subr.bf16.mxu0 0
    %104 = vmatpush1.bf16.msra.mxu0 0
    %105 = vmatprep.subr.bf16.mxu0 0
    %106 = vmatpush1.bf16.msra.mxu0 0
    %107 = vmatprep.subr.bf16.mxu0 0
    %108 = vmatpush1.bf16.msra.mxu0 0
    %109 = vmatprep.subr.bf16.mxu0 0
    %110 = vmatpush1.bf16.msra.mxu0 0
    %111 = vmatprep.subr.bf16.mxu0 0
    %112 = vmatpush1.bf16.msra.mxu0 0
    %113 = vmatprep.subr.bf16.mxu0 0
    %114 = vmatpush1.bf16.msra.mxu0 0
    %115 = vmatprep.subr.bf16.mxu0 0
    %116 = vmatpush1.bf16.msra.mxu0 0
    %117 = vmatprep.subr.bf16.mxu0 0
    %118 = vmatpush1.bf16.msra.mxu0 0
    %119 = vmatprep.subr.bf16.mxu0 0
    %120 = vmatpush1.bf16.msra.mxu0 0
    %121 = vmatprep.subr.bf16.mxu0 0
    %122 = vmatpush1.bf16.msra.mxu0 0
    %123 = vmatprep.subr.bf16.mxu0 0
    %124 = vmatpush1.bf16.msra.mxu0 0
    %125 = vmatprep.subr.bf16.mxu0 0
    %126 = vmatpush1.bf16.msra.mxu0 0
    %127 = vmatprep.subr.bf16.mxu0 0
    %128 = vmatpush1.bf16.msra.mxu0 0
    %129 = vmatprep.mubr.bf16.mxu0 0
    %130 = vmatmul.mubr.bf16.gmra.mrb[0].mxu0 %v95
    %v131 = vpop.f32.mrb[0].mxu0
    %v132 = vadd.f32 %v74, %v131
    %v133 = vpop.f32.mrb[0].mxu0
    %v134 = vpop.f32.mrb[0].mxu0
    %v135 = vadd.f32 %v74, %v134
    %v136 = vpop.f32.mrb[0].mxu0
    %137 = vdwg.mxu0
    %v138 = vmax.f32 %v132, 0.0
    %v139 = vmax.f32 %v135, 0.0
    %v140 = vpack.c.bf16 %v139, %v138
    %v141 = vld [vmem:[#allocation7] sm:$0xf]
    %v142 = vld [vmem:[#allocation7 + $0x4] sm:$0xf]
    %v143 = vld [vmem:[#allocation7 + $0x8] sm:$0xf]
    %v144 = vld [vmem:[#allocation7 + $0xc] sm:$0xf]
    %v145 = vld [vmem:[#allocation7 + $0x10] sm:$0xf]
    %v146 = vld [vmem:[#allocation7 + $0x14] sm:$0xf]
    %v147 = vld [vmem:[#allocation7 + $0x18] sm:$0xf]
    %v148 = vld [vmem:[#allocation7 + $0x1c] sm:$0xf]
    %v149 = vld [vmem:[#allocation7 + $0x20] sm:$0xf]
    %v150 = vld [vmem:[#allocation7 + $0x24] sm:$0xf]
    %v151 = vld [vmem:[#allocation7 + $0x28] sm:$0xf]
    %v152 = vld [vmem:[#allocation7 + $0x2c] sm:$0xf]
    %v153 = vld [vmem:[#allocation7 + $0x30] sm:$0xf]
    %v154 = vld [vmem:[#allocation7 + $0x34] sm:$0xf]
    %v155 = vld [vmem:[#allocation7 + $0x38] sm:$0xf]
    %v156 = vld [vmem:[#allocation7 + $0x3c] sm:$0xf]
    %v157 = vld [vmem:[%s4] sm:$0x1]
    %v159 = vlaneseq
    %v160 = vshrl.u32 %v159, 7
    %v161 = vsub.s32 0, %v160
    %v162 = vrot.slane %v157, %v161
    %v180 = vunpack.c.l.b16 %v141
    %v181 = vunpack.c.l.b16 %v142
    %v182 = vunpack.c.l.b16 %v143
    %v183 = vunpack.c.l.b16 %v144
    %v184 = vunpack.c.l.b16 %v145
    %v185 = vunpack.c.l.b16 %v146
    %v186 = vunpack.c.l.b16 %v147
    %v187 = vunpack.c.l.b16 %v148
    %v188 = vunpack.c.l.b16 %v149
    %v189 = vunpack.c.l.b16 %v150
    %v190 = vunpack.c.l.b16 %v151
    %v191 = vunpack.c.l.b16 %v152
    %v192 = vunpack.c.l.b16 %v153
    %v193 = vunpack.c.l.b16 %v154
    %v194 = vunpack.c.l.b16 %v155
    %v195 = vunpack.c.l.b16 %v156
    %v196 = vpack.c.b16 %v181, %v180
    %v197 = vpack.c.b16 %v183, %v182
    %v198 = vpack.c.b16 %v185, %v184
    %v199 = vpack.c.b16 %v187, %v186
    %v200 = vpack.c.b16 %v189, %v188
    %v201 = vpack.c.b16 %v191, %v190
    %v202 = vpack.c.b16 %v193, %v192
    %v203 = vpack.c.b16 %v195, %v194
    %212 = vmatprep.subr.bf16.mxu0 0
    %213 = vmatpush1.bf16.msra.mxu0 %v196
    %214 = vmatprep.subr.bf16.mxu0 0
    %215 = vmatpush1.bf16.msra.mxu0 %v197
    %216 = vmatprep.subr.bf16.mxu0 0
    %217 = vmatpush1.bf16.msra.mxu0 %v198
    %218 = vmatprep.subr.bf16.mxu0 0
    %219 = vmatpush1.bf16.msra.mxu0 %v199
    %220 = vmatprep.subr.bf16.mxu0 0
    %221 = vmatpush1.bf16.msra.mxu0 %v200
    %222 = vmatprep.subr.bf16.mxu0 0
    %223 = vmatpush1.bf16.msra.mxu0 %v201
    %224 = vmatprep.subr.bf16.mxu0 0
    %225 = vmatpush1.bf16.msra.mxu0 %v202
    %226 = vmatprep.subr.bf16.mxu0 0
    %227 = vmatpush1.bf16.msra.mxu0 %v203
    %228 = vmatprep.subr.bf16.mxu0 0
    %229 = vmatpush1.bf16.msra.mxu0 0
    %230 = vmatprep.subr.bf16.mxu0 0
    %231 = vmatpush1.bf16.msra.mxu0 0
    %232 = vmatprep.subr.bf16.mxu0 0
    %233 = vmatpush1.bf16.msra.mxu0 0
    %234 = vmatprep.subr.bf16.mxu0 0
    %235 = vmatpush1.bf16.msra.mxu0 0
    %236 = vmatprep.subr.bf16.mxu0 0
    %237 = vmatpush1.bf16.msra.mxu0 0
    %238 = vmatprep.subr.bf16.mxu0 0
    %239 = vmatpush1.bf16.msra.mxu0 0
    %240 = vmatprep.subr.bf16.mxu0 0
    %241 = vmatpush1.bf16.msra.mxu0 0
    %242 = vmatprep.subr.bf16.mxu0 0
    %243 = vmatpush1.bf16.msra.mxu0 0
    %244 = vmatprep.mubr.bf16.mxu0 0
    %245 = vmatmul.mubr.bf16.gmra.mrb[0].mxu0 %v140
    %v246 = vpop.f32.mrb[0].mxu0
    %v247 = vadd.f32 %v162, %v246
    %v248 = vpop.f32.mrb[0].mxu0
    %v249 = vpop.f32.mrb[0].mxu0
    %v250 = vadd.f32 %v162, %v249
    %v251 = vpop.f32.mrb[0].mxu0
    %252 = vdwg.mxu0
    %253 = vst [vmem:[#allocation8] sm:$0xff] %v247
    %254 = vst [vmem:[#allocation8 + $0x8] sm:$0xff] %v250
    // Predicated region
    $region34: #{tpu_custom_call.1} parent=1 // pred_check
      _
    $region35: #{tpu_custom_call.1} parent=1 // pred_check_branch
      %256 = sbr.rel (0) target = $region37
    $region36: #{tpu_custom_call.1} parent=1 // pred_region
      %s258 = ssub.s32 256, 256
      %259 = vsyncadd [#allocation4], %s258
      %s260 = sshll.u32 [#allocation8], 4
      %s261 = int_to_ptr.vmem [resolvable:$true] %s260
      %266 = dma.vmem_to_hbm [thread:$0]  %s261, 256, %s5, [#allocation4], 128, 128, 8
    $region37: #{tpu_custom_call.1} parent=1 // pred_fallthru
      _
    // Predicated region
    $region38: #{tpu_custom_call.1} parent=1 // pred_check
      _
    $region39: #{tpu_custom_call.1} parent=1 // pred_check_branch
      %268 = sbr.rel (0) target = $region41
    $region40: #{tpu_custom_call.1} parent=1 // pred_region
      %269 = dma.done [#allocation4], 256
    $region41: #{tpu_custom_call.1} parent=1 // pred_fallthru
      _
    %270 = vsyncpa [#allocation3], 1
    %271 = vsyncpa [#allocation6], 1
    %272 = vsyncpa [#allocation4], 1

// kernel: tpu_custom_call.1
$region0: #{tpu_custom_call.1}
  #allocation0 [shape = 'u32[]', space=smem, size = 0x4, offset = 0x4, fixed_abs, tag = 'smem constant byte address 0x4 - core index']
  #allocation1 [shape = 'u32[144,128]{1,0:T(1,128)}', space=vmem, size = 0x12000, scoped, tag = 'internal scratch']
  %s0 = inlined_call_operand.hbm [shape: bf16[16,32], index: 0, kind: input, shape index: {}]
  %s1 = inlined_call_operand.hbm [shape: bf16[32,128], index: 1, kind: input, shape index: {}]
  %s2 = inlined_call_operand.vmem [shape: f32[1,128], index: 2, kind: input, shape index: {}]
  %s3 = inlined_call_operand.hbm [shape: bf16[128,128], index: 3, kind: input, shape index: {}]
  %s4 = inlined_call_operand.vmem [shape: f32[1,128], index: 4, kind: input, shape index: {}]
  %s5 = inlined_call_operand.hbm [shape: f32[16,128], index: 5, kind: output, shape index: {}]
  %s6 = sld [smem:[#allocation0]]
  $region42: #{tpu_custom_call.1} parent=0
    _
  %s8 = ssub.s32 1, %s6
  %s9 = scalar_select 0, %s8, %s6
  $region1: #{tpu_custom_call.1} parent=0
    #allocation2 [shape = 'u8[4096]{0}', space=vmem, size = 0x1000, scoped, tag = 'input window, operand 0, single buffered']
    #allocation3 [shape = 's32[1]{0}', space=sflag, size = 0x4, scoped, tag = 'scoped memory for tpu_custom_call.1']
    #allocation4 [shape = 's32[1]{0}', space=sflag, size = 0x4, scoped, tag = 'scoped memory for tpu_custom_call.1']
    #allocation5 [shape = 'u8[8192]{0}', space=vmem, size = 0x2000, scoped, tag = 'input window, operand 1, single buffered']
    #allocation6 [shape = 's32[1]{0}', space=sflag, size = 0x4, scoped, tag = 'scoped memory for tpu_custom_call.1']
    #allocation7 [shape = 'u8[32768]{0}', space=vmem, size = 0x8000, scoped, tag = 'input window, operand 3, single buffered']
    #allocation8 [shape = 'u8[8192]{0}', space=vmem, size = 0x2000, scoped, tag = 'output window, operand 0, single buffered']
    %10 = vsyncpa [#allocation3], 0
    %11 = vsyncpa [#allocation6], 0
    %12 = vsyncpa [#allocation4], 0
    // Predicated region
    $region2: #{tpu_custom_call.1} parent=1 // pred_check
      _
    $region3: #{tpu_custom_call.1} parent=1 // pred_check_branch
      %14 = sbr.rel (0) target = $region5
    $region4: #{tpu_custom_call.1} parent=1 // pred_region
      %s16 = ssub.s32 128, 128
      %17 = vsyncadd [#allocation3], %s16
      %s18 = sshll.u32 [#allocation2], 4
      %s19 = int_to_ptr.vmem [resolvable:$true] %s18
      %24 = dma.hbm_to_vmem [thread:$0]  %s0, 128, %s19, [#allocation3], 64, 64, 4
    $region5: #{tpu_custom_call.1} parent=1 // pred_fallthru
      _
    // Predicated region
    $region6: #{tpu_custom_call.1} parent=1 // pred_check
      _
    $region7: #{tpu_custom_call.1} parent=1 // pred_check_branch
      %26 = sbr.rel (0) target = $region9
    $region8: #{tpu_custom_call.1} parent=1 // pred_region
      %s28 = ssub.s32 256, 256
      %29 = vsyncadd [#allocation6], %s28
      %s30 = sshll.u32 [#allocation5], 4
      %s31 = int_to_ptr.vmem [resolvable:$true] %s30
      %36 = dma.hbm_to_vmem [thread:$0]  %s1, 256, %s31, [#allocation6], 64, 64, 4
    $region9: #{tpu_custom_call.1} parent=1 // pred_fallthru
      _
    // Predicated region
    $region10: #{tpu_custom_call.1} parent=1 // pred_check
      _
    $region11: #{tpu_custom_call.1} parent=1 // pred_check_branch
      %38 = sbr.rel (0) target = $region13
    $region12: #{tpu_custom_call.1} parent=1 // pred_region
      _
    $region13: #{tpu_custom_call.1} parent=1 // pred_fallthru
      _
    // Predicated region
    $region14: #{tpu_custom_call.1} parent=1 // pred_check
      _
    $region15: #{tpu_custom_call.1} parent=1 // pred_check_branch
      %40 = sbr.rel (0) target = $region17
    $region16: #{tpu_custom_call.1} parent=1 // pred_region
      %s42 = ssub.s32 1024, 1024
      %43 = vsyncadd [#allocation6], %s42
      %s44 = sshll.u32 [#allocation7], 4
      %s45 = int_to_ptr.vmem [resolvable:$true] %s44
      %50 = dma.hbm_to_vmem [thread:$0]  %s3, 1024, %s45, [#allocation6], 64, 64, 4
    $region17: #{tpu_custom_call.1} parent=1 // pred_fallthru
      _
    // Predicated region
    $region18: #{tpu_custom_call.1} parent=1 // pred_check
      _
    $region19: #{tpu_custom_call.1} parent=1 // pred_check_branch
      %52 = sbr.rel (0) target = $region21
    $region20: #{tpu_custom_call.1} parent=1 // pred_region
      _
    $region21: #{tpu_custom_call.1} parent=1 // pred_fallthru
      _
    // Predicated region
    $region22: #{tpu_custom_call.1} parent=1 // pred_check
      _
    $region23: #{tpu_custom_call.1} parent=1 // pred_check_branch
      %54 = sbr.rel (0) target = $region25
    $region24: #{tpu_custom_call.1} parent=1 // pred_region
      %55 = dma.done [#allocation3], 128
    $region25: #{tpu_custom_call.1} parent=1 // pred_fallthru
      _
    // Predicated region
    $region26: #{tpu_custom_call.1} parent=1 // pred_check
      _
    $region27: #{tpu_custom_call.1} parent=1 // pred_check_branch
      %57 = sbr.rel (0) target = $region29
    $region28: #{tpu_custom_call.1} parent=1 // pred_region
      %58 = dma.done [#allocation6], 256
    $region29: #{tpu_custom_call.1} parent=1 // pred_fallthru
      _
    // Predicated region
    $region30: #{tpu_custom_call.1} parent=1 // pred_check
      _
    $region31: #{tpu_custom_call.1} parent=1 // pred_check_branch
      %60 = sbr.rel (0) target = $region33
    $region32: #{tpu_custom_call.1} parent=1 // pred_region
      %61 = dma.done [#allocation6], 1024
    $region33: #{tpu_custom_call.1} parent=1 // pred_fallthru
      _
    %v63 = vld [vmem:[#allocation2] sm:$0xf]
    %v64 = vld [vmem:[#allocation2 + $0x4] sm:$0xf]
    %v65 = vld [vmem:[#allocation5] sm:$0xf]
    %v66 = vld [vmem:[#allocation5 + $0x4] sm:$0xf]
    %v67 = vld [vmem:[#allocation5 + $0x8] sm:$0xf]
    %v68 = vld [vmem:[#allocation5 + $0xc] sm:$0xf]
    %v69 = vld [vmem:[%s2] sm:$0x1]
    %v71 = vlaneseq
    %v72 = vshrl.u32 %v71, 7
    %v73 = vsub.s32 0, %v72
    %v74 = vrot.slane %v69, %v73
    %v78 = vunpack.c.l.b16 %v63
    %v79 = vunpack.c.l.b16 %v64
    %v80 = vpack.c.b16 %v79, %v78
    %v85 = vunpack.c.l.b16 %v65
    %v86 = vunpack.c.l.b16 %v66
    %v87 = vunpack.c.l.b16 %v67
    %v88 = vunpack.c.l.b16 %v68
    %v89 = vpack.c.b16 %v86, %v85
    %v90 = vpack.c.b16 %v88, %v87
    %vm93 = vcmask 261120
    %v95 = vsel %vm93, %v80, 0
    %97 = vmatprep.subr.bf16.mxu0 0
    %98 = vmatpush1.bf16.msra.mxu0 %v89
    %99 = vmatprep.subr.bf16.mxu0 0
    %100 = vmatpush1.bf16.msra.mxu0 %v90
    %101 = vmatprep.subr.bf16.mxu0 0
    %102 = vmatpush1.bf16.msra.mxu0 0
    %103 = vmatprep.subr.bf16.mxu0 0
    %104 = vmatpush1.bf16.msra.mxu0 0
    %105 = vmatprep.subr.bf16.mxu0 0
    %106 = vmatpush1.bf16.msra.mxu0 0
    %107 = vmatprep.subr.bf16.mxu0 0
    %108 = vmatpush1.bf16.msra.mxu0 0
    %109 = vmatprep.subr.bf16.mxu0 0
    %110 = vmatpush1.bf16.msra.mxu0 0
    %111 = vmatprep.subr.bf16.mxu0 0
    %112 = vmatpush1.bf16.msra.mxu0 0
    %113 = vmatprep.subr.bf16.mxu0 0
    %114 = vmatpush1.bf16.msra.mxu0 0
    %115 = vmatprep.subr.bf16.mxu0 0
    %116 = vmatpush1.bf16.msra.mxu0 0
    %117 = vmatprep.subr.bf16.mxu0 0
    %118 = vmatpush1.bf16.msra.mxu0 0
    %119 = vmatprep.subr.bf16.mxu0 0
    %120 = vmatpush1.bf16.msra.mxu0 0
    %121 = vmatprep.subr.bf16.mxu0 0
    %122 = vmatpush1.bf16.msra.mxu0 0
    %123 = vmatprep.subr.bf16.mxu0 0
    %124 = vmatpush1.bf16.msra.mxu0 0
    %125 = vmatprep.subr.bf16.mxu0 0
    %126 = vmatpush1.bf16.msra.mxu0 0
    %127 = vmatprep.subr.bf16.mxu0 0
    %128 = vmatpush1.bf16.msra.mxu0 0
    %129 = vmatprep.mubr.bf16.mxu0 0
    %130 = vmatmul.mubr.bf16.gmra.mrb[0].mxu0 %v95
    %v131 = vpop.f32.mrb[0].mxu0
    %v132 = vadd.f32 %v74, %v131
    %v133 = vpop.f32.mrb[0].mxu0
    %v134 = vpop.f32.mrb[0].mxu0
    %v135 = vadd.f32 %v74, %v134
    %v136 = vpop.f32.mrb[0].mxu0
    %137 = vdwg.mxu0
    %v138 = vmax.f32 %v132, 0.0
    %v139 = vmax.f32 %v135, 0.0
    %v140 = vpack.c.bf16 %v139, %v138
    %v141 = vld [vmem:[#allocation7] sm:$0xf]
    %v142 = vld [vmem:[#allocation7 + $0x4] sm:$0xf]
    %v143 = vld [vmem:[#allocation7 + $0x8] sm:$0xf]
    %v144 = vld [vmem:[#allocation7 + $0xc] sm:$0xf]
    %v145 = vld [vmem:[#allocation7 + $0x10] sm:$0xf]
    %v146 = vld [vmem:[#allocation7 + $0x14] sm:$0xf]
    %v147 = vld [vmem:[#allocation7 + $0x18] sm:$0xf]
    %v148 = vld [vmem:[#allocation7 + $0x1c] sm:$0xf]
    %v149 = vld [vmem:[#allocation7 + $0x20] sm:$0xf]
    %v150 = vld [vmem:[#allocation7 + $0x24] sm:$0xf]
    %v151 = vld [vmem:[#allocation7 + $0x28] sm:$0xf]
    %v152 = vld [vmem:[#allocation7 + $0x2c] sm:$0xf]
    %v153 = vld [vmem:[#allocation7 + $0x30] sm:$0xf]
    %v154 = vld [vmem:[#allocation7 + $0x34] sm:$0xf]
    %v155 = vld [vmem:[#allocation7 + $0x38] sm:$0xf]
    %v156 = vld [vmem:[#allocation7 + $0x3c] sm:$0xf]
    %v157 = vld [vmem:[%s4] sm:$0x1]
    %v159 = vlaneseq
    %v160 = vshrl.u32 %v159, 7
    %v161 = vsub.s32 0, %v160
    %v162 = vrot.slane %v157, %v161
    %v180 = vunpack.c.l.b16 %v141
    %v181 = vunpack.c.l.b16 %v142
    %v182 = vunpack.c.l.b16 %v143
    %v183 = vunpack.c.l.b16 %v144
    %v184 = vunpack.c.l.b16 %v145
    %v185 = vunpack.c.l.b16 %v146
    %v186 = vunpack.c.l.b16 %v147
    %v187 = vunpack.c.l.b16 %v148
    %v188 = vunpack.c.l.b16 %v149
    %v189 = vunpack.c.l.b16 %v150
    %v190 = vunpack.c.l.b16 %v151
    %v191 = vunpack.c.l.b16 %v152
    %v192 = vunpack.c.l.b16 %v153
    %v193 = vunpack.c.l.b16 %v154
    %v194 = vunpack.c.l.b16 %v155
    %v195 = vunpack.c.l.b16 %v156
    %v196 = vpack.c.b16 %v181, %v180
    %v197 = vpack.c.b16 %v183, %v182
    %v198 = vpack.c.b16 %v185, %v184
    %v199 = vpack.c.b16 %v187, %v186
    %v200 = vpack.c.b16 %v189, %v188
    %v201 = vpack.c.b16 %v191, %v190
    %v202 = vpack.c.b16 %v193, %v192
    %v203 = vpack.c.b16 %v195, %v194
    %212 = vmatprep.subr.bf16.mxu0 0
    %213 = vmatpush1.bf16.msra.mxu0 %v196
    %214 = vmatprep.subr.bf16.mxu0 0
    %215 = vmatpush1.bf16.msra.mxu0 %v197
    %216 = vmatprep.subr.bf16.mxu0 0
    %217 = vmatpush1.bf16.msra.mxu0 %v198
    %218 = vmatprep.subr.bf16.mxu0 0
    %219 = vmatpush1.bf16.msra.mxu0 %v199
    %220 = vmatprep.subr.bf16.mxu0 0
    %221 = vmatpush1.bf16.msra.mxu0 %v200
    %222 = vmatprep.subr.bf16.mxu0 0
    %223 = vmatpush1.bf16.msra.mxu0 %v201
    %224 = vmatprep.subr.bf16.mxu0 0
    %225 = vmatpush1.bf16.msra.mxu0 %v202
    %226 = vmatprep.subr.bf16.mxu0 0
    %227 = vmatpush1.bf16.msra.mxu0 %v203
    %228 = vmatprep.subr.bf16.mxu0 0
    %229 = vmatpush1.bf16.msra.mxu0 0
    %230 = vmatprep.subr.bf16.mxu0 0
    %231 = vmatpush1.bf16.msra.mxu0 0
    %232 = vmatprep.subr.bf16.mxu0 0
    %233 = vmatpush1.bf16.msra.mxu0 0
    %234 = vmatprep.subr.bf16.mxu0 0
    %235 = vmatpush1.bf16.msra.mxu0 0
    %236 = vmatprep.subr.bf16.mxu0 0
    %237 = vmatpush1.bf16.msra.mxu0 0
    %238 = vmatprep.subr.bf16.mxu0 0
    %239 = vmatpush1.bf16.msra.mxu0 0
    %240 = vmatprep.subr.bf16.mxu0 0
    %241 = vmatpush1.bf16.msra.mxu0 0
    %242 = vmatprep.subr.bf16.mxu0 0
    %243 = vmatpush1.bf16.msra.mxu0 0
    %244 = vmatprep.mubr.bf16.mxu0 0
    %245 = vmatmul.mubr.bf16.gmra.mrb[0].mxu0 %v140
    %v246 = vpop.f32.mrb[0].mxu0
    %v247 = vadd.f32 %v162, %v246
    %v248 = vpop.f32.mrb[0].mxu0
    %v249 = vpop.f32.mrb[0].mxu0
    %v250 = vadd.f32 %v162, %v249
    %v251 = vpop.f32.mrb[0].mxu0
    %252 = vdwg.mxu0
    %253 = vst [vmem:[#allocation8] sm:$0xff] %v247
    %254 = vst [vmem:[#allocation8 + $0x8] sm:$0xff] %v250
    // Predicated region
    $region34: #{tpu_custom_call.1} parent=1 // pred_check
      _
    $region35: #{tpu_custom_call.1} parent=1 // pred_check_branch
      %256 = sbr.rel (0) target = $region37
    $region36: #{tpu_custom_call.1} parent=1 // pred_region
      %s258 = ssub.s32 256, 256
      %259 = vsyncadd [#allocation4], %s258
      %s260 = sshll.u32 [#allocation8], 4
      %s261 = int_to_ptr.vmem [resolvable:$true] %s260
      %266 = dma.vmem_to_hbm [thread:$0]  %s261, 256, %s5, [#allocation4], 128, 128, 8
    $region37: #{tpu_custom_call.1} parent=1 // pred_fallthru
      _
    // Predicated region
    $region38: #{tpu_custom_call.1} parent=1 // pred_check
      _
    $region39: #{tpu_custom_call.1} parent=1 // pred_check_branch
      %268 = sbr.rel (0) target = $region41
    $region40: #{tpu_custom_call.1} parent=1 // pred_region
      %269 = dma.done [#allocation4], 256
    $region41: #{tpu_custom_call.1} parent=1 // pred_fallthru
      _
    %270 = vsyncpa [#allocation3], 1
    %271 = vsyncpa [#allocation6], 1
    %272 = vsyncpa [#allocation4], 1

</llo_original>
